<compile_context>
chip_gen: v7x
topology: tpu7x:2x2x1
jax: 0.10.0
libtpu: 0.0.40
codegen_flags: <defaults>
</compile_context>

<pallas_src>
import jax
import jax.numpy as jnp
import numpy as np
from jax.experimental import pallas as pl
from jax.experimental.pallas import tpu as pltpu

H = 32          # hidden_size
V = 40          # output_size (vocab)
L = 60          # max_length
DROPOUT_P = 0.1 # inference mode -> identity

# ---- packed weight/bias slab layout (f32, shape (SLAB_ROWS, SLAB_COLS)) ----
# rows 0:H      -> "emb" half of the 2H-wide fused input (also x / h_new rows)
# rows H:2H     -> "hid" half
# row  BIAS_ROW -> bias row of each segment
# every segment starts (and is padded) at a 128-lane boundary:
SEG1, SEG1_W = 0, 384     # matmul-1 columns:
ATTN_OFF = 0              #   cols   0: 60  attn logits  (Wa_e | Wa_h, bias ba)
GH_OFF   = 128            #   cols 128:224  GRU hidden gates r|z|n (Wh*, bias bh*)
COMB_OFF = 256            #   cols 256:288  attn_combine emb-term (Wc_e, bias bc)
SEGC = 384                # width 128: Wc_a   (enc' = enc @ Wc_a precompute)
SEG3 = 512                # width 128: GRU input gates r|z|n (Wi*, bias bi*)
SEG4 = 640                # width 128: output projection (Wout, bias bout)
BIAS_ROW = 2 * H          # 64
SLAB_ROWS = 72            # 65 rows padded to a multiple of 8
SLAB_COLS = 768           # 6 x 128 lanes

# packed lane-dense per-step output row (128-aligned segments)
OUT_W = 384
OUT_LOGP, OUT_ATTN, OUT_HID = 0, 128, 256


def _sigmoid(x):
    return 1.0 / (1.0 + jnp.exp(-x))


def attn_decoder_kernel(tok_ref, emb_tab_ref, hid0_ref, enc_ref, w_ref, out_ref,
                        h_scr, encp_scr):
    t = pl.program_id(0)

    # one-time setup: seed carried hidden state, precompute enc' = enc @ Wc_a
    @pl.when(t == 0)
    def _():
        h_scr[...] = hid0_ref[...]
        encp_scr[...] = jnp.dot(enc_ref[...], w_ref[0:H, SEGC:SEGC + 128],
                                preferred_element_type=jnp.float32)

    # --- embedding lookup (whole 5 KB table is VMEM-resident) ----------------
    tok = tok_ref[t]
    emb = emb_tab_ref[pl.ds(tok, 1), :]              # (1, H)
    hid = h_scr[...]                                  # (1, H)

    # --- matmul 1: [emb | hid] @ W1 -> attn logits | GRU hidden gates | combine
    eh = jnp.concatenate([emb, hid], axis=-1)         # (1, 2H)
    m1 = (jnp.dot(eh, w_ref[0:2 * H, SEG1:SEG1 + SEG1_W],
                  preferred_element_type=jnp.float32)
          + w_ref[BIAS_ROW:BIAS_ROW + 1, SEG1:SEG1 + SEG1_W])   # (1, 384)

    # --- softmax over max_length ---------------------------------------------
    attn_logits = m1[:, ATTN_OFF:ATTN_OFF + L]        # (1, L)
    mx = jnp.max(attn_logits, axis=-1, keepdims=True)
    e = jnp.exp(attn_logits - mx)
    attn_w = e * pl.reciprocal(jnp.sum(e, axis=-1, keepdims=True), approx=False)

    # --- matmul 2 + attn_combine + ReLU (emb@Wc_e + bc already in m1) --------
    comb = m1[:, COMB_OFF:COMB_OFF + 128] + jnp.dot(
        attn_w, encp_scr[...], preferred_element_type=jnp.float32)   # (1, 128)
    x = jnp.maximum(comb[:, 0:H], 0.0)                # (1, H)

    # --- matmul 3 + single-step GRU (PyTorch gate order r, z, n) -------------
    gi = (jnp.dot(x, w_ref[0:H, SEG3:SEG3 + 128],
                  preferred_element_type=jnp.float32)
          + w_ref[BIAS_ROW:BIAS_ROW + 1, SEG3:SEG3 + 128])      # (1, 128)
    gh = m1[:, GH_OFF:GH_OFF + 128]                              # (1, 128)
    g = _sigmoid(gi + gh)
    r = g[:, 0:H]
    z = g[:, H:2 * H]
    n = jnp.tanh(gi[:, 2 * H:3 * H] + r * gh[:, 2 * H:3 * H])
    h_new = (1.0 - z) * n + z * hid                              # (1, H)
    h_scr[...] = h_new

    # --- matmul 4: output head + log_softmax ---------------------------------
    logits = (jnp.dot(h_new, w_ref[0:H, SEG4:SEG4 + 128],
                      preferred_element_type=jnp.float32)
              + w_ref[BIAS_ROW:BIAS_ROW + 1, SEG4:SEG4 + 128])[:, 0:V]
    lm = jnp.max(logits, axis=-1, keepdims=True)
    shifted = logits - lm
    logp = shifted - jnp.log(jnp.sum(jnp.exp(shifted), axis=-1, keepdims=True))

    # --- single lane-dense packed store; segments at 128-aligned offsets -----
    row = jnp.concatenate(
        [logp,   jnp.zeros((1, 128 - V), jnp.float32),
         attn_w, jnp.zeros((1, 128 - L), jnp.float32),
         h_new,  jnp.zeros((1, 128 - H), jnp.float32)], axis=-1)   # (1, 384)
    out_ref[...] = row.reshape(1, 1, OUT_W)


def init_params(key):
    """Deterministic synthetic per-layer parameters (shapes implied by the PyTorch module)."""
    ks = jax.random.split(key, 24)
    u = lambda k, shape: jax.random.uniform(k, shape, jnp.float32, -0.1, 0.1)
    p = {}
    p["embedding"] = u(ks[0], (V, H))
    # attn: Linear(2H, L) split into embedded / hidden halves, stored (in, out)
    p["wa_e"] = u(ks[1], (H, L)); p["wa_h"] = u(ks[2], (H, L)); p["ba"] = u(ks[3], (1, L))
    # attn_combine: Linear(2H, H)
    p["wc_e"] = u(ks[4], (H, H)); p["wc_a"] = u(ks[5], (H, H)); p["bc"] = u(ks[6], (1, H))
    # GRU(H, H): weight_ih / weight_hh split by gate (r, z, n), stored (in, out)
    p["wir"] = u(ks[7], (H, H));  p["wiz"] = u(ks[8], (H, H));  p["win"] = u(ks[9], (H, H))
    p["bir"] = u(ks[10], (1, H)); p["biz"] = u(ks[11], (1, H)); p["bin"] = u(ks[12], (1, H))
    p["whr"] = u(ks[13], (H, H)); p["whz"] = u(ks[14], (H, H)); p["whn"] = u(ks[15], (H, H))
    p["bhr"] = u(ks[16], (1, H)); p["bhz"] = u(ks[17], (1, H)); p["bhn"] = u(ks[18], (1, H))
    # out: Linear(H, V)
    p["wout"] = u(ks[19], (H, V)); p["bout"] = u(ks[20], (1, V))
    return p


def pack_params(p):
    """One-time packing of all weights/biases into a single (72, 768) f32 slab."""
    w = jnp.zeros((SLAB_ROWS, SLAB_COLS), jnp.float32)
    # SEG1: attn logits
    w = w.at[0:H,      ATTN_OFF:ATTN_OFF + L].set(p["wa_e"])
    w = w.at[H:2 * H,  ATTN_OFF:ATTN_OFF + L].set(p["wa_h"])
    w = w.at[BIAS_ROW, ATTN_OFF:ATTN_OFF + L].set(p["ba"][0])
    # SEG1: GRU hidden gates (emb rows are 0 so only hid contributes)
    w = w.at[H:2 * H,  GH_OFF:GH_OFF + H].set(p["whr"])
    w = w.at[H:2 * H,  GH_OFF + H:GH_OFF + 2 * H].set(p["whz"])
    w = w.at[H:2 * H,  GH_OFF + 2 * H:GH_OFF + 3 * H].set(p["whn"])
    w = w.at[BIAS_ROW, GH_OFF:GH_OFF + H].set(p["bhr"][0])
    w = w.at[BIAS_ROW, GH_OFF + H:GH_OFF + 2 * H].set(p["bhz"][0])
    w = w.at[BIAS_ROW, GH_OFF + 2 * H:GH_OFF + 3 * H].set(p["bhn"][0])
    # SEG1: attn_combine embedded-input term (hid rows are 0)
    w = w.at[0:H,      COMB_OFF:COMB_OFF + H].set(p["wc_e"])
    w = w.at[BIAS_ROW, COMB_OFF:COMB_OFF + H].set(p["bc"][0])
    # SEGC: attn_combine attn_applied-input term (used once: enc' = enc @ Wc_a)
    w = w.at[0:H,      SEGC:SEGC + H].set(p["wc_a"])
    # SEG3: GRU input gates
    w = w.at[0:H,      SEG3:SEG3 + H].set(p["wir"])
    w = w.at[0:H,      SEG3 + H:SEG3 + 2 * H].set(p["wiz"])
    w = w.at[0:H,      SEG3 + 2 * H:SEG3 + 3 * H].set(p["win"])
    w = w.at[BIAS_ROW, SEG3:SEG3 + H].set(p["bir"][0])
    w = w.at[BIAS_ROW, SEG3 + H:SEG3 + 2 * H].set(p["biz"][0])
    w = w.at[BIAS_ROW, SEG3 + 2 * H:SEG3 + 3 * H].set(p["bin"][0])
    # SEG4: output projection
    w = w.at[0:H,      SEG4:SEG4 + V].set(p["wout"])
    w = w.at[BIAS_ROW, SEG4:SEG4 + V].set(p["bout"][0])
    return {"embedding": p["embedding"].astype(jnp.float32), "w_slab": w}


def attn_decoder_decode(tokens, hidden, encoder_outputs, packed):
    """Fused T-step decode (teacher-forced token sequence).

    tokens: int (T,) / (T,1); hidden: (1,1,H); encoder_outputs: (L,H).
    Returns (logp (T,V), hiddens (T,H), attn_weights (T,L)) — one row per step.
    """
    tokens = tokens.reshape(-1).astype(jnp.int32)
    T = tokens.shape[0]
    hid2d = hidden.reshape((1, H)).astype(jnp.float32)
    enc = encoder_outputs.astype(jnp.float32)

    grid_spec = pltpu.PrefetchScalarGridSpec(
        num_scalar_prefetch=1,
        grid=(T,),
        in_specs=[
            # constant block index -> DMA'd once, VMEM-resident for all T steps
            pl.BlockSpec((V, H), lambda t, tok: (0, 0)),                    # embedding table
            pl.BlockSpec((1, H), lambda t, tok: (0, 0)),                    # initial hidden
            pl.BlockSpec((L, H), lambda t, tok: (0, 0)),                    # encoder outputs
            pl.BlockSpec((SLAB_ROWS, SLAB_COLS), lambda t, tok: (0, 0)),    # packed weights
        ],
        out_specs=pl.BlockSpec((1, 1, OUT_W), lambda t, tok: (t, 0, 0)),
        scratch_shapes=[
            pltpu.VMEM((1, H), jnp.float32),     # hidden state carried across steps
            pltpu.VMEM((L, 128), jnp.float32),   # enc' = enc @ Wc_a (step-0 precompute)
        ],
    )

    out = pl.pallas_call(
        attn_decoder_kernel,
        grid_spec=grid_spec,
        out_shape=jax.ShapeDtypeStruct((T, 1, OUT_W), jnp.float32),
        compiler_params=pltpu.CompilerParams(dimension_semantics=("arbitrary",)),
    )(tokens, packed["embedding"], hid2d, enc, packed["w_slab"])

    out = out.reshape(T, OUT_W)
    logp = out[:, OUT_LOGP:OUT_LOGP + V]
    attn_w = out[:, OUT_ATTN:OUT_ATTN + L]
    hiddens = out[:, OUT_HID:OUT_HID + H]
    return logp, hiddens, attn_w


def attn_decoder_forward(token, hidden, encoder_outputs, packed):
    """Single decoding step — exact semantics of AttnDecoderRNN.forward (eval mode)."""
    logp, hiddens, attn_w = attn_decoder_decode(
        token.reshape((1,)), hidden, encoder_outputs, packed)
    return logp, hiddens.reshape((1, 1, H)), attn_w


def reference_forward(token, hidden, encoder_outputs, p):
    """Pure-JAX reference mirroring the PyTorch forward (eval mode)."""
    emb = p["embedding"][token.reshape(())].reshape(1, H)
    hid = hidden.reshape(1, H)
    attn_logits = emb @ p["wa_e"] + hid @ p["wa_h"] + p["ba"]
    attn_w = jax.nn.softmax(attn_logits, axis=-1)
    attn_applied = attn_w @ encoder_outputs
    x = jnp.maximum(emb @ p["wc_e"] + attn_applied @ p["wc_a"] + p["bc"], 0.0)
    sig = jax.nn.sigmoid
    r = sig(x @ p["wir"] + p["bir"] + hid @ p["whr"] + p["bhr"])
    z = sig(x @ p["wiz"] + p["biz"] + hid @ p["whz"] + p["bhz"])
    n = jnp.tanh(x @ p["win"] + p["bin"] + r * (hid @ p["whn"] + p["bhn"]))
    h_new = (1.0 - z) * n + z * hid
    logp = jax.nn.log_softmax(h_new @ p["wout"] + p["bout"], axis=-1)
    return logp, h_new.reshape(1, 1, H), attn_w


if __name__ == "__main__":
    key = jax.random.PRNGKey(0)
    pkey, hkey, ekey, tkey = jax.random.split(key, 4)

    params = init_params(pkey)
    packed = pack_params(params)          # one-time packing at param-init time
    hidden0 = jax.random.normal(hkey, (1, 1, H), jnp.float32) * 0.1
    encoder_outputs = jax.random.normal(ekey, (L, H), jnp.float32) * 0.1

    # --- single decode step (module forward semantics) ----------------------
    for tok_id in (7, 37):
        token = jnp.array([[tok_id]], dtype=jnp.int32)
        logp, new_hidden, attn_w = attn_decoder_forward(token, hidden0, encoder_outputs, packed)
        jax.block_until_ready((logp, new_hidden, attn_w))

        r_logp, r_hidden, r_attn = reference_forward(token, hidden0, encoder_outputs, params)
        np.testing.assert_allclose(np.asarray(logp), np.asarray(r_logp), rtol=2e-5, atol=2e-5)
        np.testing.assert_allclose(np.asarray(new_hidden), np.asarray(r_hidden), rtol=2e-5, atol=2e-5)
        np.testing.assert_allclose(np.asarray(attn_w), np.asarray(r_attn), rtol=2e-5, atol=2e-5)
        assert logp.shape == (1, V) and new_hidden.shape == (1, 1, H) and attn_w.shape == (1, L)

    # --- fused T-step decode: one pallas_call, resident weights/enc ----------
    T = 8
    tokens = jax.random.randint(tkey, (T,), 0, V, dtype=jnp.int32)
    logp_seq, hid_seq, attn_seq = attn_decoder_decode(tokens, hidden0, encoder_outputs, packed)
    jax.block_until_ready((logp_seq, hid_seq, attn_seq))
    assert logp_seq.shape == (T, V) and hid_seq.shape == (T, H) and attn_seq.shape == (T, L)

    hid = hidden0
    for t in range(T):
        tok = tokens[t].reshape(1, 1)
        r_logp, hid, r_attn = reference_forward(tok, hid, encoder_outputs, params)
        np.testing.assert_allclose(np.asarray(logp_seq[t:t + 1]), np.asarray(r_logp),
                                   rtol=5e-5, atol=5e-5)
        np.testing.assert_allclose(np.asarray(attn_seq[t:t + 1]), np.asarray(r_attn),
                                   rtol=5e-5, atol=5e-5)
        np.testing.assert_allclose(np.asarray(hid_seq[t:t + 1]), np.asarray(hid.reshape(1, H)),
                                   rtol=5e-5, atol=5e-5)

    print("KERNEL_OK")
</pallas_src>

<mosaic_0001>
module attributes {stable_mosaic.version = 11 : i64} {
  func.func @attn_decoder_kernel(%arg0: i32, %arg1: memref<1xi32, #tpu.memory_space<smem>>, %arg2: memref<40x32xf32, #tpu.memory_space<vmem>>, %arg3: memref<1x32xf32, #tpu.memory_space<vmem>>, %arg4: memref<60x32xf32, #tpu.memory_space<vmem>>, %arg5: memref<72x768xf32, #tpu.memory_space<vmem>>, %arg6: memref<1x1x384xf32, #tpu.memory_space<vmem>>, %arg7: memref<1x32xf32, #tpu.memory_space<vmem>>, %arg8: memref<60x128xf32, #tpu.memory_space<vmem>>) attributes {dimension_semantics = [#tpu.dimension_semantics<arbitrary>], iteration_bounds = array<i64: 1>, scalar_prefetch = 1 : i64, scratch_operands = 2 : i64, tpu.core_type = #tpu.core_type<tc>, window_params = [{pipeline_mode = #tpu.pipeline_mode<synchronous>, transform_indices = @transform_0, window_bounds = array<i64: 40, 32>}, {pipeline_mode = #tpu.pipeline_mode<synchronous>, transform_indices = @transform_1, window_bounds = array<i64: 1, 32>}, {pipeline_mode = #tpu.pipeline_mode<synchronous>, transform_indices = @transform_2, window_bounds = array<i64: 60, 32>}, {pipeline_mode = #tpu.pipeline_mode<synchronous>, transform_indices = @transform_3, window_bounds = array<i64: 72, 768>}, {transform_indices = @transform_4, window_bounds = array<i64: 1, 1, 384>}]} {
    %c0_i32 = arith.constant 0 : i32
    %0 = arith.cmpi eq, %arg0, %c0_i32 : i32
    %1 = arith.extui %0 : i1 to i32
    %c0_i32_0 = arith.constant 0 : i32
    %2 = arith.cmpi ne, %1, %c0_i32_0 : i32
    scf.if %2 {
      %c0_34 = arith.constant 0 : index
      %c0_35 = arith.constant 0 : index
      %78 = vector.load %arg3[%c0_34, %c0_35] : memref<1x32xf32, #tpu.memory_space<vmem>>, vector<1x32xf32>
      %c0_36 = arith.constant 0 : index
      %c0_37 = arith.constant 0 : index
      %79 = vector.load %arg7[%c0_36, %c0_37] : memref<1x32xf32, #tpu.memory_space<vmem>>, vector<1x32xf32>
      tpu.vector_store %arg7[%c0_36, %c0_37], %78 {strides = array<i32>} : memref<1x32xf32, #tpu.memory_space<vmem>>, vector<1x32xf32>,
      %c0_38 = arith.constant 0 : index
      %c0_39 = arith.constant 0 : index
      %80 = vector.load %arg4[%c0_38, %c0_39] : memref<60x32xf32, #tpu.memory_space<vmem>>, vector<60x32xf32>
      %c0_40 = arith.constant 0 : index
      %c384 = arith.constant 384 : index
      %81 = vector.load %arg5[%c0_40, %c384] : memref<72x768xf32, #tpu.memory_space<vmem>>, vector<32x128xf32>
      %cst_41 = arith.constant dense<0.000000e+00> : vector<60x128xf32>
      %82 = tpu.matmul %80, %81, %cst_41 {dimension_numbers = #tpu.dot_dimension_numbers<[1], [0], [0], [1], [0, 0, 1, 1], [], []>} : vector<60x32xf32>, vector<32x128xf32>, vector<60x128xf32> -> vector<60x128xf32>
      %c0_42 = arith.constant 0 : index
      %c0_43 = arith.constant 0 : index
      %83 = vector.load %arg8[%c0_42, %c0_43] : memref<60x128xf32, #tpu.memory_space<vmem>>, vector<60x128xf32>
      tpu.vector_store %arg8[%c0_42, %c0_43], %82 {strides = array<i32>} : memref<60x128xf32, #tpu.memory_space<vmem>>, vector<60x128xf32>,
    } else {
    }
    %3 = arith.index_cast %arg0 : i32 to index
    %4 = memref.load %arg1[%3] : memref<1xi32, #tpu.memory_space<smem>>
    %5 = arith.index_cast %4 : i32 to index
    %c0 = arith.constant 0 : index
    %6 = vector.load %arg2[%5, %c0] : memref<40x32xf32, #tpu.memory_space<vmem>>, vector<1x32xf32>
    %c0_1 = arith.constant 0 : index
    %c0_2 = arith.constant 0 : index
    %7 = vector.load %arg7[%c0_1, %c0_2] : memref<1x32xf32, #tpu.memory_space<vmem>>, vector<1x32xf32>
    %8 = tpu.concatenate %6, %7 in 1 : vector<1x32xf32>, vector<1x32xf32> -> vector<1x64xf32>
    %c0_3 = arith.constant 0 : index
    %c0_4 = arith.constant 0 : index
    %9 = vector.load %arg5[%c0_3, %c0_4] : memref<72x768xf32, #tpu.memory_space<vmem>>, vector<64x384xf32>
    %cst = arith.constant dense<0.000000e+00> : vector<1x384xf32>
    %10 = tpu.matmul %8, %9, %cst {dimension_numbers = #tpu.dot_dimension_numbers<[1], [0], [0], [1], [0, 0, 1, 1], [], []>} : vector<1x64xf32>, vector<64x384xf32>, vector<1x384xf32> -> vector<1x384xf32>
    %c64 = arith.constant 64 : index
    %c0_5 = arith.constant 0 : index
    %11 = vector.load %arg5[%c64, %c0_5] : memref<72x768xf32, #tpu.memory_space<vmem>>, vector<1x384xf32>
    %12 = arith.addf %10, %11 : vector<1x384xf32>
    %13 = vector.extract_strided_slice %12 {offsets = [0, 0], sizes = [1, 60], strides = [1, 1]} : vector<1x384xf32> to vector<1x60xf32>
    %cst_6 = arith.constant dense<0xFF800000> : vector<1xf32>
    %14 = vector.multi_reduction <maximumf>, %13, %cst_6 [1] : vector<1x60xf32> to vector<1xf32>
    %15 = vector.shape_cast %14 : vector<1xf32> to vector<1x1xf32>
    %16 = vector.broadcast %15 : vector<1x1xf32> to vector<1x60xf32>
    %17 = arith.subf %13, %16 : vector<1x60xf32>
    %18 = math.exp %17 : vector<1x60xf32>
    %cst_7 = arith.constant dense<0.000000e+00> : vector<1xf32>
    %19 = vector.multi_reduction <add>, %18, %cst_7 [1] : vector<1x60xf32> to vector<1xf32>
    %20 = vector.shape_cast %19 : vector<1xf32> to vector<1x1xf32>
    %21 = tpu.reciprocal %20 : vector<1x1xf32> -> vector<1x1xf32>
    %22 = vector.broadcast %21 : vector<1x1xf32> to vector<1x60xf32>
    %23 = arith.mulf %18, %22 : vector<1x60xf32>
    %24 = vector.extract_strided_slice %12 {offsets = [0, 256], sizes = [1, 128], strides = [1, 1]} : vector<1x384xf32> to vector<1x128xf32>
    %c0_8 = arith.constant 0 : index
    %c0_9 = arith.constant 0 : index
    %25 = vector.load %arg8[%c0_8, %c0_9] : memref<60x128xf32, #tpu.memory_space<vmem>>, vector<60x128xf32>
    %cst_10 = arith.constant dense<0.000000e+00> : vector<1x128xf32>
    %26 = tpu.matmul %23, %25, %cst_10 {dimension_numbers = #tpu.dot_dimension_numbers<[1], [0], [0], [1], [0, 0, 1, 1], [], []>} : vector<1x60xf32>, vector<60x128xf32>, vector<1x128xf32> -> vector<1x128xf32>
    %27 = arith.addf %24, %26 : vector<1x128xf32>
    %28 = vector.extract_strided_slice %27 {offsets = [0, 0], sizes = [1, 32], strides = [1, 1]} : vector<1x128xf32> to vector<1x32xf32>
    %cst_11 = arith.constant 0.000000e+00 : f32
    %29 = vector.broadcast %cst_11 : f32 to vector<1x32xf32>
    %30 = arith.maximumf %28, %29 : vector<1x32xf32>
    %c0_12 = arith.constant 0 : index
    %c512 = arith.constant 512 : index
    %31 = vector.load %arg5[%c0_12, %c512] : memref<72x768xf32, #tpu.memory_space<vmem>>, vector<32x128xf32>
    %cst_13 = arith.constant dense<0.000000e+00> : vector<1x128xf32>
    %32 = tpu.matmul %30, %31, %cst_13 {dimension_numbers = #tpu.dot_dimension_numbers<[1], [0], [0], [1], [0, 0, 1, 1], [], []>} : vector<1x32xf32>, vector<32x128xf32>, vector<1x128xf32> -> vector<1x128xf32>
    %c64_14 = arith.constant 64 : index
    %c512_15 = arith.constant 512 : index
    %33 = vector.load %arg5[%c64_14, %c512_15] : memref<72x768xf32, #tpu.memory_space<vmem>>, vector<1x128xf32>
    %34 = arith.addf %32, %33 : vector<1x128xf32>
    %35 = vector.extract_strided_slice %12 {offsets = [0, 128], sizes = [1, 128], strides = [1, 1]} : vector<1x384xf32> to vector<1x128xf32>
    %36 = arith.addf %34, %35 : vector<1x128xf32>
    %cst_16 = arith.constant 0.000000e+00 : f32
    %37 = vector.broadcast %cst_16 : f32 to vector<1x128xf32>
    %38 = arith.subf %37, %36 : vector<1x128xf32>
    %39 = math.exp %38 : vector<1x128xf32>
    %cst_17 = arith.constant 1.000000e+00 : f32
    %40 = vector.broadcast %cst_17 : f32 to vector<1x128xf32>
    %41 = arith.addf %40, %39 : vector<1x128xf32>
    %cst_18 = arith.constant 1.000000e+00 : f32
    %42 = vector.broadcast %cst_18 : f32 to vector<1x128xf32>
    %43 = arith.divf %42, %41 : vector<1x128xf32>
    %44 = vector.extract_strided_slice %43 {offsets = [0, 0], sizes = [1, 32], strides = [1, 1]} : vector<1x128xf32> to vector<1x32xf32>
    %45 = vector.extract_strided_slice %43 {offsets = [0, 32], sizes = [1, 32], strides = [1, 1]} : vector<1x128xf32> to vector<1x32xf32>
    %46 = vector.extract_strided_slice %34 {offsets = [0, 64], sizes = [1, 32], strides = [1, 1]} : vector<1x128xf32> to vector<1x32xf32>
    %47 = vector.extract_strided_slice %35 {offsets = [0, 64], sizes = [1, 32], strides = [1, 1]} : vector<1x128xf32> to vector<1x32xf32>
    %48 = arith.mulf %44, %47 : vector<1x32xf32>
    %49 = arith.addf %46, %48 : vector<1x32xf32>
    %50 = math.tanh %49 : vector<1x32xf32>
    %cst_19 = arith.constant 1.000000e+00 : f32
    %51 = vector.broadcast %cst_19 : f32 to vector<1x32xf32>
    %52 = arith.subf %51, %45 : vector<1x32xf32>
    %53 = arith.mulf %52, %50 : vector<1x32xf32>
    %54 = arith.mulf %45, %7 : vector<1x32xf32>
    %55 = arith.addf %53, %54 : vector<1x32xf32>
    %c0_20 = arith.constant 0 : index
    %c0_21 = arith.constant 0 : index
    %56 = vector.load %arg7[%c0_20, %c0_21] : memref<1x32xf32, #tpu.memory_space<vmem>>, vector<1x32xf32>
    tpu.vector_store %arg7[%c0_20, %c0_21], %55 {strides = array<i32>} : memref<1x32xf32, #tpu.memory_space<vmem>>, vector<1x32xf32>,
    %c0_22 = arith.constant 0 : index
    %c640 = arith.constant 640 : index
    %57 = vector.load %arg5[%c0_22, %c640] : memref<72x768xf32, #tpu.memory_space<vmem>>, vector<32x128xf32>
    %cst_23 = arith.constant dense<0.000000e+00> : vector<1x128xf32>
    %58 = tpu.matmul %55, %57, %cst_23 {dimension_numbers = #tpu.dot_dimension_numbers<[1], [0], [0], [1], [0, 0, 1, 1], [], []>} : vector<1x32xf32>, vector<32x128xf32>, vector<1x128xf32> -> vector<1x128xf32>
    %c64_24 = arith.constant 64 : index
    %c640_25 = arith.constant 640 : index
    %59 = vector.load %arg5[%c64_24, %c640_25] : memref<72x768xf32, #tpu.memory_space<vmem>>, vector<1x128xf32>
    %60 = arith.addf %58, %59 : vector<1x128xf32>
    %61 = vector.extract_strided_slice %60 {offsets = [0, 0], sizes = [1, 40], strides = [1, 1]} : vector<1x128xf32> to vector<1x40xf32>
    %cst_26 = arith.constant dense<0xFF800000> : vector<1xf32>
    %62 = vector.multi_reduction <maximumf>, %61, %cst_26 [1] : vector<1x40xf32> to vector<1xf32>
    %63 = vector.shape_cast %62 : vector<1xf32> to vector<1x1xf32>
    %64 = vector.broadcast %63 : vector<1x1xf32> to vector<1x40xf32>
    %65 = arith.subf %61, %64 : vector<1x40xf32>
    %66 = math.exp %65 : vector<1x40xf32>
    %cst_27 = arith.constant dense<0.000000e+00> : vector<1xf32>
    %67 = vector.multi_reduction <add>, %66, %cst_27 [1] : vector<1x40xf32> to vector<1xf32>
    %68 = vector.shape_cast %67 : vector<1xf32> to vector<1x1xf32>
    %69 = math.log %68 : vector<1x1xf32>
    %70 = vector.broadcast %69 : vector<1x1xf32> to vector<1x40xf32>
    %71 = arith.subf %65, %70 : vector<1x40xf32>
    %cst_28 = arith.constant 0.000000e+00 : f32
    %72 = vector.broadcast %cst_28 : f32 to vector<1x88xf32>
    %cst_29 = arith.constant 0.000000e+00 : f32
    %73 = vector.broadcast %cst_29 : f32 to vector<1x68xf32>
    %cst_30 = arith.constant 0.000000e+00 : f32
    %74 = vector.broadcast %cst_30 : f32 to vector<1x96xf32>
    %75 = tpu.concatenate %71, %72, %23, %73, %55, %74 in 1 : vector<1x40xf32>, vector<1x88xf32>, vector<1x60xf32>, vector<1x68xf32>, vector<1x32xf32>, vector<1x96xf32> -> vector<1x384xf32>
    %76 = vector.shape_cast %75 : vector<1x384xf32> to vector<1x1x384xf32>
    %c0_31 = arith.constant 0 : index
    %c0_32 = arith.constant 0 : index
    %c0_33 = arith.constant 0 : index
    %77 = vector.load %arg6[%c0_31, %c0_32, %c0_33] : memref<1x1x384xf32, #tpu.memory_space<vmem>>, vector<1x1x384xf32>
    tpu.vector_store %arg6[%c0_31, %c0_32, %c0_33], %76 {strides = array<i32>} : memref<1x1x384xf32, #tpu.memory_space<vmem>>, vector<1x1x384xf32>,
    return
  }
  func.func @transform_0(%arg0: i32, %arg1: memref<1xi32, #tpu.memory_space<smem>>) -> (i32, i32) {
    %c0_i32 = arith.constant 0 : i32
    %c0_i32_0 = arith.constant 0 : i32
    %c0_i32_1 = arith.constant 0 : i32
    return %c0_i32, %c0_i32_0 : i32, i32
  }
  func.func @transform_1(%arg0: i32, %arg1: memref<1xi32, #tpu.memory_space<smem>>) -> (i32, i32) {
    %c0_i32 = arith.constant 0 : i32
    %c0_i32_0 = arith.constant 0 : i32
    %c0_i32_1 = arith.constant 0 : i32
    return %c0_i32, %c0_i32_0 : i32, i32
  }
  func.func @transform_2(%arg0: i32, %arg1: memref<1xi32, #tpu.memory_space<smem>>) -> (i32, i32) {
    %c0_i32 = arith.constant 0 : i32
    %c0_i32_0 = arith.constant 0 : i32
    %c0_i32_1 = arith.constant 0 : i32
    return %c0_i32, %c0_i32_0 : i32, i32
  }
  func.func @transform_3(%arg0: i32, %arg1: memref<1xi32, #tpu.memory_space<smem>>) -> (i32, i32) {
    %c0_i32 = arith.constant 0 : i32
    %c0_i32_0 = arith.constant 0 : i32
    %c0_i32_1 = arith.constant 0 : i32
    return %c0_i32, %c0_i32_0 : i32, i32
  }
  func.func @transform_4(%arg0: i32, %arg1: memref<1xi32, #tpu.memory_space<smem>>) -> (i32, i32, i32) {
    %c0_i32 = arith.constant 0 : i32
    %c0_i32_0 = arith.constant 0 : i32
    %c0_i32_1 = arith.constant 0 : i32
    return %arg0, %c0_i32, %c0_i32_0 : i32, i32, i32
  }
}

</mosaic_0001>

<llo_original>
// kernel: tpu_custom_call.1
$region0: #{tpu_custom_call.1}
  #allocation0 [shape = 'u32[]', space=smem, size = 0x4, offset = 0x4, fixed_abs, tag = 'smem constant byte address 0x4 - core index']
  #allocation1 [shape = 'u32[144,128]{1,0:T(1,128)}', space=vmem, size = 0x12000, scoped, tag = 'internal scratch']
  #allocation2 [shape = 'f32[1,32]{1,0:T(1,128)}', space=vmem, size = 0x200, scoped, tag = 'scratch operand']
  #allocation3 [shape = 'f32[60,128]{1,0:T(8,128)}', space=vmem, size = 0x8000, scoped, tag = 'scratch operand']
  #allocation4 [shape = 's32[1]{0}', space=sflag, size = 0x4, scoped, tag = 'scoped memory for tpu_custom_call.1']
  #allocation5 [shape = 's32[1]{0:T(128)S(6)}', space=smem, size = 0x200, scoped, tag = 'prefetched SMEM operand 0']
  %s0 = inlined_call_operand.<no memory space> [shape: s32[1], index: 0, kind: input, shape index: {}]
  %s1 = inlined_call_operand.vmem [shape: f32[40,32], index: 1, kind: input, shape index: {}]
  %s2 = inlined_call_operand.vmem [shape: f32[1,32], index: 2, kind: input, shape index: {}]
  %s3 = inlined_call_operand.vmem [shape: f32[60,32], index: 3, kind: input, shape index: {}]
  %s4 = inlined_call_operand.hbm [shape: f32[72,768], index: 4, kind: input, shape index: {}]
  %s5 = inlined_call_operand.hbm [shape: f32[1,1,384], index: 5, kind: output, shape index: {}]
  %s6 = sld [smem:[#allocation0]]
  $region34: #{tpu_custom_call.1} parent=0
    _
  %s8 = ssub.s32 1, %s6
  %s9 = scalar_select 0, %s8, %s6
  %10 = sst [smem:[#allocation5]] %s0
  $region1: #{tpu_custom_call.1} parent=0
    #allocation6 [shape = 'u8[221184]{0}', space=vmem, size = 0x36000, scoped, tag = 'input window, operand 4, single buffered']
    #allocation7 [shape = 's32[1]{0}', space=sflag, size = 0x4, scoped, tag = 'scoped memory for tpu_custom_call.1']
    #allocation8 [shape = 's32[1]{0}', space=sflag, size = 0x4, scoped, tag = 'scoped memory for tpu_custom_call.1']
    #allocation9 [shape = 'u8[1536]{0}', space=vmem, size = 0x800, scoped, tag = 'output window, operand 0, single buffered']
    %11 = vsyncpa [#allocation7], 0
    %12 = vsyncpa [#allocation8], 0
    // Predicated region
    $region2: #{tpu_custom_call.1} parent=1 // pred_check
      _
    $region3: #{tpu_custom_call.1} parent=1 // pred_check_branch
      %14 = sbr.rel (0) target = $region5
    $region4: #{tpu_custom_call.1} parent=1 // pred_region
      _
    $region5: #{tpu_custom_call.1} parent=1 // pred_fallthru
      _
    // Predicated region
    $region6: #{tpu_custom_call.1} parent=1 // pred_check
      _
    $region7: #{tpu_custom_call.1} parent=1 // pred_check_branch
      %16 = sbr.rel (0) target = $region9
    $region8: #{tpu_custom_call.1} parent=1 // pred_region
      _
    $region9: #{tpu_custom_call.1} parent=1 // pred_fallthru
      _
    // Predicated region
    $region10: #{tpu_custom_call.1} parent=1 // pred_check
      _
    $region11: #{tpu_custom_call.1} parent=1 // pred_check_branch
      %18 = sbr.rel (0) target = $region13
    $region12: #{tpu_custom_call.1} parent=1 // pred_region
      _
    $region13: #{tpu_custom_call.1} parent=1 // pred_fallthru
      _
    // Predicated region
    $region14: #{tpu_custom_call.1} parent=1 // pred_check
      _
    $region15: #{tpu_custom_call.1} parent=1 // pred_check_branch
      %20 = sbr.rel (0) target = $region17
    $region16: #{tpu_custom_call.1} parent=1 // pred_region
      %s22 = ssub.s32 6912, 6912
      %23 = vsyncadd [#allocation7], %s22
      %s24 = sshll.u32 [#allocation6], 4
      %s25 = int_to_ptr.vmem [resolvable:$true] %s24
      %30 = dma.hbm_to_vmem [thread:$0]  %s4, 6912, %s25, [#allocation7], 768, 768, 48
    $region17: #{tpu_custom_call.1} parent=1 // pred_fallthru
      _
    // Predicated region
    $region18: #{tpu_custom_call.1} parent=1 // pred_check
      _
    $region19: #{tpu_custom_call.1} parent=1 // pred_check_branch
      %32 = sbr.rel (0) target = $region21
    $region20: #{tpu_custom_call.1} parent=1 // pred_region
      %33 = dma.done [#allocation7], 6912
    $region21: #{tpu_custom_call.1} parent=1 // pred_fallthru
      _
    %p34 = scmp.eq.s32.totalorder 0, 0
    // Predicated region
    $region22: #{tpu_custom_call.1} parent=1 // pred_check
      %p35 = pneg %p34
    $region23: #{tpu_custom_call.1} parent=1 // pred_check_branch
      %37 = sbr.rel (%p35) target = $region25
    $region24: #{tpu_custom_call.1} parent=1 // pred_region
      %v38 = vld [vmem:[%s2] sm:$0x1]
      %vm39 = vcmask 253952
      %40 = vst.msk [vmem:[#allocation2] sm:$0x1] %vm39, %v38
      %v41 = vld [vmem:[%s3] sm:$0xff]
      %v42 = vld [vmem:[%s3 + $0x8] sm:$0xff]
      %v43 = vld [vmem:[%s3 + $0x10] sm:$0xff]
      %v44 = vld [vmem:[%s3 + $0x18] sm:$0xff]
      %v45 = vld [vmem:[%s3 + $0x20] sm:$0xff]
      %v46 = vld [vmem:[%s3 + $0x28] sm:$0xff]
      %v47 = vld [vmem:[%s3 + $0x30] sm:$0xff]
      %v48 = vld [vmem:[%s3 + $0x38] sm:$0xf]
      %v49 = vld [vmem:[#allocation6 + $0x18] sm:$0xff]
      %v50 = vld [vmem:[#allocation6 + $0x48] sm:$0xff]
      %v51 = vld [vmem:[#allocation6 + $0x78] sm:$0xff]
      %v52 = vld [vmem:[#allocation6 + $0xa8] sm:$0xff]
      %vm53 = vcmask 261120
      %v55 = vsel %vm53, %v41, 0
      %v58 = vsel %vm53, %v42, 0
      %v61 = vsel %vm53, %v43, 0
      %v64 = vsel %vm53, %v44, 0
      %v67 = vsel %vm53, %v45, 0
      %v70 = vsel %vm53, %v46, 0
      %v73 = vsel %vm53, %v47, 0
      %v76 = vsel %vm53, %v48, 0
      %78 = vmatprep.subr.mxu0 0.0
      %79 = vmatpush1.msra.mxu0 %v49
      %80 = vmatprep.subr.mxu0 0.0
      %81 = vmatpush1.msra.mxu0 %v50
      %82 = vmatprep.subr.mxu0 0.0
      %83 = vmatpush1.msra.mxu0 %v51
      %84 = vmatprep.subr.mxu0 0.0
      %85 = vmatpush1.msra.mxu0 %v52
      %86 = vmatprep.subr.mxu0 0.0
      %87 = vmatpush1.msra.mxu0 0.0
      %88 = vmatprep.subr.mxu0 0.0
      %89 = vmatpush1.msra.mxu0 0.0
      %90 = vmatprep.subr.mxu0 0.0
      %91 = vmatpush1.msra.mxu0 0.0
      %92 = vmatprep.subr.mxu0 0.0
      %93 = vmatpush1.msra.mxu0 0.0
      %94 = vmatprep.subr.mxu0 0.0
      %95 = vmatpush1.msra.mxu0 0.0
      %96 = vmatprep.subr.mxu0 0.0
      %97 = vmatpush1.msra.mxu0 0.0
      %98 = vmatprep.subr.mxu0 0.0
      %99 = vmatpush1.msra.mxu0 0.0
      %100 = vmatprep.subr.mxu0 0.0
      %101 = vmatpush1.msra.mxu0 0.0
      %102 = vmatprep.subr.mxu0 0.0
      %103 = vmatpush1.msra.mxu0 0.0
      %104 = vmatprep.subr.mxu0 0.0
      %105 = vmatpush1.msra.mxu0 0.0
      %106 = vmatprep.subr.mxu0 0.0
      %107 = vmatpush1.msra.mxu0 0.0
      %108 = vmatprep.subr.mxu0 0.0
      %109 = vmatpush1.msra.mxu0 0.0
      %110 = vmatprep.subr.mxu0 0.0
      %111 = vmatpush1.msra.mxu0 0.0
      %112 = vmatprep.subr.mxu0 0.0
      %113 = vmatpush1.msra.mxu0 0.0
      %114 = vmatprep.subr.mxu0 0.0
      %115 = vmatpush1.msra.mxu0 0.0
      %116 = vmatprep.subr.mxu0 0.0
      %117 = vmatpush1.msra.mxu0 0.0
      %118 = vmatprep.subr.mxu0 0.0
      %119 = vmatpush1.msra.mxu0 0.0
      %120 = vmatprep.subr.mxu0 0.0
      %121 = vmatpush1.msra.mxu0 0.0
      %122 = vmatprep.subr.mxu0 0.0
      %123 = vmatpush1.msra.mxu0 0.0
      %124 = vmatprep.subr.mxu0 0.0
      %125 = vmatpush1.msra.mxu0 0.0
      %126 = vmatprep.subr.mxu0 0.0
      %127 = vmatpush1.msra.mxu0 0.0
      %128 = vmatprep.subr.mxu0 0.0
      %129 = vmatpush1.msra.mxu0 0.0
      %130 = vmatprep.subr.mxu0 0.0
      %131 = vmatpush1.msra.mxu0 0.0
      %132 = vmatprep.subr.mxu0 0.0
      %133 = vmatpush1.msra.mxu0 0.0
      %134 = vmatprep.subr.mxu0 0.0
      %135 = vmatpush1.msra.mxu0 0.0
      %136 = vmatprep.subr.mxu0 0.0
      %137 = vmatpush1.msra.mxu0 0.0
      %138 = vmatprep.subr.mxu0 0.0
      %139 = vmatpush1.msra.mxu0 0.0
      %140 = vmatprep.subr.mxu0 0.0
      %141 = vmatpush1.msra.mxu0 0.0
      %142 = vmatprep.mubr.f32.mxu0 0.0
      %143 = vmatmul.mubr.f32.gmra.mrb[0].mxu0 %v55
      %v144 = vpop.f32.mrb[0].mxu0
      %v145 = vadd.f32 0.0, %v144
      %v146 = vpop.f32.mrb[0].mxu0
      %147 = vmatprep.mubr.f32.mxu0 0.0
      %148 = vmatmul.mubr.f32.gmra.mrb[0].mxu0 %v58
      %v149 = vpop.f32.mrb[0].mxu0
      %v150 = vadd.f32 0.0, %v149
      %v151 = vpop.f32.mrb[0].mxu0
      %152 = vmatprep.mubr.f32.mxu0 0.0
      %153 = vmatmul.mubr.f32.gmra.mrb[0].mxu0 %v61
      %v154 = vpop.f32.mrb[0].mxu0
      %v155 = vadd.f32 0.0, %v154
      %v156 = vpop.f32.mrb[0].mxu0
      %157 = vmatprep.mubr.f32.mxu0 0.0
      %158 = vmatmul.mubr.f32.gmra.mrb[0].mxu0 %v64
      %v159 = vpop.f32.mrb[0].mxu0
      %v160 = vadd.f32 0.0, %v159
      %v161 = vpop.f32.mrb[0].mxu0
      %162 = vmatprep.mubr.f32.mxu0 0.0
      %163 = vmatmul.mubr.f32.gmra.mrb[0].mxu0 %v67
      %v164 = vpop.f32.mrb[0].mxu0
      %v165 = vadd.f32 0.0, %v164
      %v166 = vpop.f32.mrb[0].mxu0
      %167 = vmatprep.mubr.f32.mxu0 0.0
      %168 = vmatmul.mubr.f32.gmra.mrb[0].mxu0 %v70
      %v169 = vpop.f32.mrb[0].mxu0
      %v170 = vadd.f32 0.0, %v169
      %v171 = vpop.f32.mrb[0].mxu0
      %172 = vmatprep.mubr.f32.mxu0 0.0
      %173 = vmatmul.mubr.f32.gmra.mrb[0].mxu0 %v73
      %v174 = vpop.f32.mrb[0].mxu0
      %v175 = vadd.f32 0.0, %v174
      %v176 = vpop.f32.mrb[0].mxu0
      %177 = vmatprep.mubr.f32.mxu0 0.0
      %178 = vmatmul.mubr.f32.gmra.mrb[0].mxu0 %v76
      %v179 = vpop.f32.mrb[0].mxu0
      %v180 = vadd.f32 0.0, %v179
      %v181 = vpop.f32.mrb[0].mxu0
      %182 = vdwg.mxu0
      %183 = vst [vmem:[#allocation3] sm:$0xff] %v145
      %184 = vst [vmem:[#allocation3 + $0x8] sm:$0xff] %v150
      %185 = vst [vmem:[#allocation3 + $0x10] sm:$0xff] %v155
      %186 = vst [vmem:[#allocation3 + $0x18] sm:$0xff] %v160
      %187 = vst [vmem:[#allocation3 + $0x20] sm:$0xff] %v165
      %188 = vst [vmem:[#allocation3 + $0x28] sm:$0xff] %v170
      %189 = vst [vmem:[#allocation3 + $0x30] sm:$0xff] %v175
      %190 = vst [vmem:[#allocation3 + $0x38] sm:$0xf] %v180
    $region25: #{tpu_custom_call.1} parent=1 // pred_fallthru
      _
    %s191 = sld [smem:[#allocation5]]
    %s192 = scalar_lea.vmem %s1, %s191
    %v193 = vld [vmem:[%s192] sm:$0x1]
    %v194 = vld [vmem:[#allocation2] sm:$0x1]
    %v196 = vlaneseq
    %v197 = vshrl.u32 %v196, 7
    %v198 = vsub.s32 0, %v197
    %v199 = vrot.slane %v194, %v198
    %200 = vrot.lane.b32.xlu0 %v199, 32
    %v201 = vpop.permute.xlu0 %200
    %vm203 = vcmask 261120
    %v204 = vsel %vm203, %v193, %v201
    %v205 = vld [vmem:[#allocation6] sm:$0xff]
    %v206 = vld [vmem:[#allocation6 + $0x8] sm:$0xff]
    %v207 = vld [vmem:[#allocation6 + $0x10] sm:$0xff]
    %v208 = vld [vmem:[#allocation6 + $0x30] sm:$0xff]
    %v209 = vld [vmem:[#allocation6 + $0x38] sm:$0xff]
    %v210 = vld [vmem:[#allocation6 + $0x40] sm:$0xff]
    %v211 = vld [vmem:[#allocation6 + $0x60] sm:$0xff]
    %v212 = vld [vmem:[#allocation6 + $0x68] sm:$0xff]
    %v213 = vld [vmem:[#allocation6 + $0x70] sm:$0xff]
    %v214 = vld [vmem:[#allocation6 + $0x90] sm:$0xff]
    %v215 = vld [vmem:[#allocation6 + $0x98] sm:$0xff]
    %v216 = vld [vmem:[#allocation6 + $0xa0] sm:$0xff]
    %v217 = vld [vmem:[#allocation6 + $0xc0] sm:$0xff]
    %v218 = vld [vmem:[#allocation6 + $0xc8] sm:$0xff]
    %v219 = vld [vmem:[#allocation6 + $0xd0] sm:$0xff]
    %v220 = vld [vmem:[#allocation6 + $0xf0] sm:$0xff]
    %v221 = vld [vmem:[#allocation6 + $0xf8] sm:$0xff]
    %v222 = vld [vmem:[#allocation6 + $0x100] sm:$0xff]
    %v223 = vld [vmem:[#allocation6 + $0x120] sm:$0xff]
    %v224 = vld [vmem:[#allocation6 + $0x128] sm:$0xff]
    %v225 = vld [vmem:[#allocation6 + $0x130] sm:$0xff]
    %v226 = vld [vmem:[#allocation6 + $0x150] sm:$0xff]
    %v227 = vld [vmem:[#allocation6 + $0x158] sm:$0xff]
    %v228 = vld [vmem:[#allocation6 + $0x160] sm:$0xff]
    %s229 = scalar_lea.vmem [#allocation6], 384
    %v230 = vld [vmem:[%s229] ss:$8 sm:$0x7]
    %v232 = vlaneseq
    %v233 = vshrl.u32 %v232, 7
    %v234 = vsub.s32 0, %v233
    %v235 = vrot.slane %v230, %v234
    %v236 = vlaneseq
    %v237 = vshrl.u32 %v236, 7
    %v238 = vsub.s32 1, %v237
    %v239 = vrot.slane %v230, %v238
    %v240 = vlaneseq
    %v241 = vshrl.u32 %v240, 7
    %v242 = vsub.s32 2, %v241
    %v243 = vrot.slane %v230, %v242
    %vm247 = vcmask 523264
    %v249 = vsel %vm247, %v204, 0
    %251 = vmatprep.subr.mxu0 %v206
    %252 = vmatpush1.msra.mxu0 %v205
    %253 = vmatprep.subr.mxu0 %v209
    %254 = vmatpush1.msra.mxu0 %v208
    %255 = vmatprep.subr.mxu0 %v212
    %256 = vmatpush1.msra.mxu0 %v211
    %257 = vmatprep.subr.mxu0 %v215
    %258 = vmatpush1.msra.mxu0 %v214
    %259 = vmatprep.subr.mxu0 %v218
    %260 = vmatpush1.msra.mxu0 %v217
    %261 = vmatprep.subr.mxu0 %v221
    %262 = vmatpush1.msra.mxu0 %v220
    %263 = vmatprep.subr.mxu0 %v224
    %264 = vmatpush1.msra.mxu0 %v223
    %265 = vmatprep.subr.mxu0 %v227
    %266 = vmatpush1.msra.mxu0 %v226
    %267 = vmatprep.subr.mxu0 0.0
    %268 = vmatpush1.msra.mxu0 0.0
    %269 = vmatprep.subr.mxu0 0.0
    %270 = vmatpush1.msra.mxu0 0.0
    %271 = vmatprep.subr.mxu0 0.0
    %272 = vmatpush1.msra.mxu0 0.0
    %273 = vmatprep.subr.mxu0 0.0
    %274 = vmatpush1.msra.mxu0 0.0
    %275 = vmatprep.subr.mxu0 0.0
    %276 = vmatpush1.msra.mxu0 0.0
    %277 = vmatprep.subr.mxu0 0.0
    %278 = vmatpush1.msra.mxu0 0.0
    %279 = vmatprep.subr.mxu0 0.0
    %280 = vmatpush1.msra.mxu0 0.0
    %281 = vmatprep.subr.mxu0 0.0
    %282 = vmatpush1.msra.mxu0 0.0
    %283 = vmatprep.subr.mxu0 0.0
    %284 = vmatpush1.msra.mxu0 0.0
    %285 = vmatprep.subr.mxu0 0.0
    %286 = vmatpush1.msra.mxu0 0.0
    %287 = vmatprep.subr.mxu0 0.0
    %288 = vmatpush1.msra.mxu0 0.0
    %289 = vmatprep.subr.mxu0 0.0
    %290 = vmatpush1.msra.mxu0 0.0
    %291 = vmatprep.subr.mxu0 0.0
    %292 = vmatpush1.msra.mxu0 0.0
    %293 = vmatprep.subr.mxu0 0.0
    %294 = vmatpush1.msra.mxu0 0.0
    %295 = vmatprep.subr.mxu0 0.0
    %296 = vmatpush1.msra.mxu0 0.0
    %297 = vmatprep.subr.mxu0 0.0
    %298 = vmatpush1.msra.mxu0 0.0
    %299 = vmatprep.subr.mxu0 0.0
    %300 = vmatpush1.msra.mxu0 0.0
    %301 = vmatprep.subr.mxu0 0.0
    %302 = vmatpush1.msra.mxu0 0.0
    %303 = vmatprep.subr.mxu0 0.0
    %304 = vmatpush1.msra.mxu0 0.0
    %305 = vmatprep.subr.mxu0 0.0
    %306 = vmatpush1.msra.mxu0 0.0
    %307 = vmatprep.subr.mxu0 0.0
    %308 = vmatpush1.msra.mxu0 0.0
    %309 = vmatprep.subr.mxu0 0.0
    %310 = vmatpush1.msra.mxu0 0.0
    %311 = vmatprep.subr.mxu0 0.0
    %312 = vmatpush1.msra.mxu0 0.0
    %313 = vmatprep.subr.mxu0 0.0
    %314 = vmatpush1.msra.mxu0 0.0
    %315 = vmatprep.mubr.f32.mxu0 0.0
    %316 = vmatmul.mubr.f32.gmra.mrb[0].mxu0 %v249
    %v317 = vpop.f32.mrb[0].mxu0
    %v318 = vadd.f32 %v235, %v317
    %v319 = vpop.f32.mrb[0].mxu0
    %v320 = vadd.f32 %v239, %v319
    %321 = vdwg.mxu0
    %322 = vmatprep.subr.mxu0 0.0
    %323 = vmatpush1.msra.mxu0 %v207
    %324 = vmatprep.subr.mxu0 0.0
    %325 = vmatpush1.msra.mxu0 %v210
    %326 = vmatprep.subr.mxu0 0.0
    %327 = vmatpush1.msra.mxu0 %v213
    %328 = vmatprep.subr.mxu0 0.0
    %329 = vmatpush1.msra.mxu0 %v216
    %330 = vmatprep.subr.mxu0 0.0
    %331 = vmatpush1.msra.mxu0 %v219
    %332 = vmatprep.subr.mxu0 0.0
    %333 = vmatpush1.msra.mxu0 %v222
    %334 = vmatprep.subr.mxu0 0.0
    %335 = vmatpush1.msra.mxu0 %v225
    %336 = vmatprep.subr.mxu0 0.0
    %337 = vmatpush1.msra.mxu0 %v228
    %338 = vmatprep.subr.mxu0 0.0
    %339 = vmatpush1.msra.mxu0 0.0
    %340 = vmatprep.subr.mxu0 0.0
    %341 = vmatpush1.msra.mxu0 0.0
    %342 = vmatprep.subr.mxu0 0.0
    %343 = vmatpush1.msra.mxu0 0.0
    %344 = vmatprep.subr.mxu0 0.0
    %345 = vmatpush1.msra.mxu0 0.0
    %346 = vmatprep.subr.mxu0 0.0
    %347 = vmatpush1.msra.mxu0 0.0
    %348 = vmatprep.subr.mxu0 0.0
    %349 = vmatpush1.msra.mxu0 0.0
    %350 = vmatprep.subr.mxu0 0.0
    %351 = vmatpush1.msra.mxu0 0.0
    %352 = vmatprep.subr.mxu0 0.0
    %353 = vmatpush1.msra.mxu0 0.0
    %354 = vmatprep.subr.mxu0 0.0
    %355 = vmatpush1.msra.mxu0 0.0
    %356 = vmatprep.subr.mxu0 0.0
    %357 = vmatpush1.msra.mxu0 0.0
    %358 = vmatprep.subr.mxu0 0.0
    %359 = vmatpush1.msra.mxu0 0.0
    %360 = vmatprep.subr.mxu0 0.0
    %361 = vmatpush1.msra.mxu0 0.0
    %362 = vmatprep.subr.mxu0 0.0
    %363 = vmatpush1.msra.mxu0 0.0
    %364 = vmatprep.subr.mxu0 0.0
    %365 = vmatpush1.msra.mxu0 0.0
    %366 = vmatprep.subr.mxu0 0.0
    %367 = vmatpush1.msra.mxu0 0.0
    %368 = vmatprep.subr.mxu0 0.0
    %369 = vmatpush1.msra.mxu0 0.0
    %370 = vmatprep.subr.mxu0 0.0
    %371 = vmatpush1.msra.mxu0 0.0
    %372 = vmatprep.subr.mxu0 0.0
    %373 = vmatpush1.msra.mxu0 0.0
    %374 = vmatprep.subr.mxu0 0.0
    %375 = vmatpush1.msra.mxu0 0.0
    %376 = vmatprep.subr.mxu0 0.0
    %377 = vmatpush1.msra.mxu0 0.0
    %378 = vmatprep.subr.mxu0 0.0
    %379 = vmatpush1.msra.mxu0 0.0
    %380 = vmatprep.subr.mxu0 0.0
    %381 = vmatpush1.msra.mxu0 0.0
    %382 = vmatprep.subr.mxu0 0.0
    %383 = vmatpush1.msra.mxu0 0.0
    %384 = vmatprep.subr.mxu0 0.0
    %385 = vmatpush1.msra.mxu0 0.0
    %386 = vmatprep.mubr.f32.mxu0 0.0
    %387 = vmatmul.mubr.f32.gmra.mrb[0].mxu0 %v249
    %v388 = vpop.f32.mrb[0].mxu0
    %v389 = vadd.f32 %v243, %v388
    %v390 = vpop.f32.mrb[0].mxu0
    %391 = vdwg.mxu0
    %vm392 = vcmask 483328
    %v393 = vsel %vm392, %v318, -inf
    %394 = vmax.xlane.f32.xlu0 %v393
    %v395 = vpop.xlane.xlu0 %394
    %v396 = vsub.f32 %v318, %v395
    %v397 = vmul.f32 %v396, 1.442695
    %v398 = vpow.pop %v397
    %v399 = vsel %vm392, %v398, 0.0
    %400 = vadd.xlane.f32.xlu0 %v399
    %v401 = vpop.xlane.xlu0 %400
    %v402 = vrcp.pop %v401
    %v403 = vmul.f32 %v398, %v402
    %v404 = vld [vmem:[#allocation3] sm:$0xff]
    %v405 = vld [vmem:[#allocation3 + $0x8] sm:$0xff]
    %v406 = vld [vmem:[#allocation3 + $0x10] sm:$0xff]
    %v407 = vld [vmem:[#allocation3 + $0x18] sm:$0xff]
    %v408 = vld [vmem:[#allocation3 + $0x20] sm:$0xff]
    %v409 = vld [vmem:[#allocation3 + $0x28] sm:$0xff]
    %v410 = vld [vmem:[#allocation3 + $0x30] sm:$0xff]
    %v411 = vld [vmem:[#allocation3 + $0x38] sm:$0xf]
    %vm412 = vcmask 490496
    %v414 = vsel %vm412, %v403, 0
    %vm416 = vcmask 1043456
    %v418 = vsel %vm416, %v411, 0
    %420 = vmatprep.subr.mxu0 0.0
    %421 = vmatpush1.msra.mxu0 %v404
    %422 = vmatprep.subr.mxu0 0.0
    %423 = vmatpush1.msra.mxu0 %v405
    %424 = vmatprep.subr.mxu0 0.0
    %425 = vmatpush1.msra.mxu0 %v406
    %426 = vmatprep.subr.mxu0 0.0
    %427 = vmatpush1.msra.mxu0 %v407
    %428 = vmatprep.subr.mxu0 0.0
    %429 = vmatpush1.msra.mxu0 %v408
    %430 = vmatprep.subr.mxu0 0.0
    %431 = vmatpush1.msra.mxu0 %v409
    %432 = vmatprep.subr.mxu0 0.0
    %433 = vmatpush1.msra.mxu0 %v410
    %434 = vmatprep.subr.mxu0 0.0
    %435 = vmatpush1.msra.mxu0 %v418
    %436 = vmatprep.subr.mxu0 0.0
    %437 = vmatpush1.msra.mxu0 0.0
    %438 = vmatprep.subr.mxu0 0.0
    %439 = vmatpush1.msra.mxu0 0.0
    %440 = vmatprep.subr.mxu0 0.0
    %441 = vmatpush1.msra.mxu0 0.0
    %442 = vmatprep.subr.mxu0 0.0
    %443 = vmatpush1.msra.mxu0 0.0
    %444 = vmatprep.subr.mxu0 0.0
    %445 = vmatpush1.msra.mxu0 0.0
    %446 = vmatprep.subr.mxu0 0.0
    %447 = vmatpush1.msra.mxu0 0.0
    %448 = vmatprep.subr.mxu0 0.0
    %449 = vmatpush1.msra.mxu0 0.0
    %450 = vmatprep.subr.mxu0 0.0
    %451 = vmatpush1.msra.mxu0 0.0
    %452 = vmatprep.subr.mxu0 0.0
    %453 = vmatpush1.msra.mxu0 0.0
    %454 = vmatprep.subr.mxu0 0.0
    %455 = vmatpush1.msra.mxu0 0.0
    %456 = vmatprep.subr.mxu0 0.0
    %457 = vmatpush1.msra.mxu0 0.0
    %458 = vmatprep.subr.mxu0 0.0
    %459 = vmatpush1.msra.mxu0 0.0
    %460 = vmatprep.subr.mxu0 0.0
    %461 = vmatpush1.msra.mxu0 0.0
    %462 = vmatprep.subr.mxu0 0.0
    %463 = vmatpush1.msra.mxu0 0.0
    %464 = vmatprep.subr.mxu0 0.0
    %465 = vmatpush1.msra.mxu0 0.0
    %466 = vmatprep.subr.mxu0 0.0
    %467 = vmatpush1.msra.mxu0 0.0
    %468 = vmatprep.subr.mxu0 0.0
    %469 = vmatpush1.msra.mxu0 0.0
    %470 = vmatprep.subr.mxu0 0.0
    %471 = vmatpush1.msra.mxu0 0.0
    %472 = vmatprep.subr.mxu0 0.0
    %473 = vmatpush1.msra.mxu0 0.0
    %474 = vmatprep.subr.mxu0 0.0
    %475 = vmatpush1.msra.mxu0 0.0
    %476 = vmatprep.subr.mxu0 0.0
    %477 = vmatpush1.msra.mxu0 0.0
    %478 = vmatprep.subr.mxu0 0.0
    %479 = vmatpush1.msra.mxu0 0.0
    %480 = vmatprep.subr.mxu0 0.0
    %481 = vmatpush1.msra.mxu0 0.0
    %482 = vmatprep.subr.mxu0 0.0
    %483 = vmatpush1.msra.mxu0 0.0
    %484 = vmatprep.mubr.f32.mxu0 0.0
    %485 = vmatmul.mubr.f32.gmra.mrb[0].mxu0 %v414
    %v486 = vpop.f32.mrb[0].mxu0
    %v487 = vadd.f32 0.0, %v486
    %v488 = vpop.f32.mrb[0].mxu0
    %489 = vdwg.mxu0
    %v490 = vadd.f32 %v389, %v487
    %v491 = vmax.f32 %v490, 0.0
    %v492 = vld [vmem:[#allocation6 + $0x20] sm:$0xff]
    %v493 = vld [vmem:[#allocation6 + $0x50] sm:$0xff]
    %v494 = vld [vmem:[#allocation6 + $0x80] sm:$0xff]
    %v495 = vld [vmem:[#allocation6 + $0xb0] sm:$0xff]
    %v496 = vld [vmem:[#allocation6 + $0x1a0] ss:$0 sm:$0xff]
    %v498 = vsel %vm203, %v491, 0
    %500 = vmatprep.subr.mxu0 0.0
    %501 = vmatpush1.msra.mxu0 %v492
    %502 = vmatprep.subr.mxu0 0.0
    %503 = vmatpush1.msra.mxu0 %v493
    %504 = vmatprep.subr.mxu0 0.0
    %505 = vmatpush1.msra.mxu0 %v494
    %506 = vmatprep.subr.mxu0 0.0
    %507 = vmatpush1.msra.mxu0 %v495
    %508 = vmatprep.subr.mxu0 0.0
    %509 = vmatpush1.msra.mxu0 0.0
    %510 = vmatprep.subr.mxu0 0.0
    %511 = vmatpush1.msra.mxu0 0.0
    %512 = vmatprep.subr.mxu0 0.0
    %513 = vmatpush1.msra.mxu0 0.0
    %514 = vmatprep.subr.mxu0 0.0
    %515 = vmatpush1.msra.mxu0 0.0
    %516 = vmatprep.subr.mxu0 0.0
    %517 = vmatpush1.msra.mxu0 0.0
    %518 = vmatprep.subr.mxu0 0.0
    %519 = vmatpush1.msra.mxu0 0.0
    %520 = vmatprep.subr.mxu0 0.0
    %521 = vmatpush1.msra.mxu0 0.0
    %522 = vmatprep.subr.mxu0 0.0
    %523 = vmatpush1.msra.mxu0 0.0
    %524 = vmatprep.subr.mxu0 0.0
    %525 = vmatpush1.msra.mxu0 0.0
    %526 = vmatprep.subr.mxu0 0.0
    %527 = vmatpush1.msra.mxu0 0.0
    %528 = vmatprep.subr.mxu0 0.0
    %529 = vmatpush1.msra.mxu0 0.0
    %530 = vmatprep.subr.mxu0 0.0
    %531 = vmatpush1.msra.mxu0 0.0
    %532 = vmatprep.subr.mxu0 0.0
    %533 = vmatpush1.msra.mxu0 0.0
    %534 = vmatprep.subr.mxu0 0.0
    %535 = vmatpush1.msra.mxu0 0.0
    %536 = vmatprep.subr.mxu0 0.0
    %537 = vmatpush1.msra.mxu0 0.0
    %538 = vmatprep.subr.mxu0 0.0
    %539 = vmatpush1.msra.mxu0 0.0
    %540 = vmatprep.subr.mxu0 0.0
    %541 = vmatpush1.msra.mxu0 0.0
    %542 = vmatprep.subr.mxu0 0.0
    %543 = vmatpush1.msra.mxu0 0.0
    %544 = vmatprep.subr.mxu0 0.0
    %545 = vmatpush1.msra.mxu0 0.0
    %546 = vmatprep.subr.mxu0 0.0
    %547 = vmatpush1.msra.mxu0 0.0
    %548 = vmatprep.subr.mxu0 0.0
    %549 = vmatpush1.msra.mxu0 0.0
    %550 = vmatprep.subr.mxu0 0.0
    %551 = vmatpush1.msra.mxu0 0.0
    %552 = vmatprep.subr.mxu0 0.0
    %553 = vmatpush1.msra.mxu0 0.0
    %554 = vmatprep.subr.mxu0 0.0
    %555 = vmatpush1.msra.mxu0 0.0
    %556 = vmatprep.subr.mxu0 0.0
    %557 = vmatpush1.msra.mxu0 0.0
    %558 = vmatprep.subr.mxu0 0.0
    %559 = vmatpush1.msra.mxu0 0.0
    %560 = vmatprep.subr.mxu0 0.0
    %561 = vmatpush1.msra.mxu0 0.0
    %562 = vmatprep.subr.mxu0 0.0
    %563 = vmatpush1.msra.mxu0 0.0
    %564 = vmatprep.mubr.f32.mxu0 0.0
    %565 = vmatmul.mubr.f32.gmra.mrb[0].mxu0 %v498
    %v566 = vpop.f32.mrb[0].mxu0
    %v567 = vadd.f32 %v496, %v566
    %v568 = vpop.f32.mrb[0].mxu0
    %569 = vdwg.mxu0
    %v570 = vadd.f32 %v567, %v320
    %v571 = vsub.f32 0.0, %v570
    %v572 = vmul.f32 %v571, 1.442695
    %v573 = vpow.pop %v572
    %v574 = vadd.f32 %v573, 1.0
    %v575 = vrcp.pop %v574
    %v576 = vmul.f32 1.0, %v575
    %578 = vrot.lane.b32.xlu0 %v320, 64
    %v579 = vpop.permute.xlu0 %578
    %v581 = vmul.f32 %v576, %v579
    %583 = vrot.lane.b32.xlu0 %v581, 64
    %v584 = vpop.permute.xlu0 %583
    %v586 = vadd.f32 %v567, %v584
    %v587 = vtanh.pop %v586
    %v588 = vsub.f32 1.0, %v576
    %590 = vrot.lane.b32.xlu0 %v587, 96
    %v591 = vpop.permute.xlu0 %590
    %v593 = vmul.f32 %v588, %v591
    %v594 = vmul.f32 %v576, %v201
    %v595 = vadd.f32 %v593, %v594
    %597 = vrot.lane.b32.xlu0 %v595, 96
    %v598 = vpop.permute.xlu0 %597
    %vm600 = vcmask 253952
    %601 = vst.msk [vmem:[#allocation2] sm:$0x1] %vm600, %v598
    %v602 = vld [vmem:[#allocation6 + $0x28] sm:$0xff]
    %v603 = vld [vmem:[#allocation6 + $0x58] sm:$0xff]
    %v604 = vld [vmem:[#allocation6 + $0x88] sm:$0xff]
    %v605 = vld [vmem:[#allocation6 + $0xb8] sm:$0xff]
    %v606 = vld [vmem:[#allocation6 + $0x1a8] ss:$0 sm:$0xff]
    %v607 = vsel %vm203, %v598, 0
    %609 = vmatprep.subr.mxu0 0.0
    %610 = vmatpush1.msra.mxu0 %v602
    %611 = vmatprep.subr.mxu0 0.0
    %612 = vmatpush1.msra.mxu0 %v603
    %613 = vmatprep.subr.mxu0 0.0
    %614 = vmatpush1.msra.mxu0 %v604
    %615 = vmatprep.subr.mxu0 0.0
    %616 = vmatpush1.msra.mxu0 %v605
    %617 = vmatprep.subr.mxu0 0.0
    %618 = vmatpush1.msra.mxu0 0.0
    %619 = vmatprep.subr.mxu0 0.0
    %620 = vmatpush1.msra.mxu0 0.0
    %621 = vmatprep.subr.mxu0 0.0
    %622 = vmatpush1.msra.mxu0 0.0
    %623 = vmatprep.subr.mxu0 0.0
    %624 = vmatpush1.msra.mxu0 0.0
    %625 = vmatprep.subr.mxu0 0.0
    %626 = vmatpush1.msra.mxu0 0.0
    %627 = vmatprep.subr.mxu0 0.0
    %628 = vmatpush1.msra.mxu0 0.0
    %629 = vmatprep.subr.mxu0 0.0
    %630 = vmatpush1.msra.mxu0 0.0
    %631 = vmatprep.subr.mxu0 0.0
    %632 = vmatpush1.msra.mxu0 0.0
    %633 = vmatprep.subr.mxu0 0.0
    %634 = vmatpush1.msra.mxu0 0.0
    %635 = vmatprep.subr.mxu0 0.0
    %636 = vmatpush1.msra.mxu0 0.0
    %637 = vmatprep.subr.mxu0 0.0
    %638 = vmatpush1.msra.mxu0 0.0
    %639 = vmatprep.subr.mxu0 0.0
    %640 = vmatpush1.msra.mxu0 0.0
    %641 = vmatprep.subr.mxu0 0.0
    %642 = vmatpush1.msra.mxu0 0.0
    %643 = vmatprep.subr.mxu0 0.0
    %644 = vmatpush1.msra.mxu0 0.0
    %645 = vmatprep.subr.mxu0 0.0
    %646 = vmatpush1.msra.mxu0 0.0
    %647 = vmatprep.subr.mxu0 0.0
    %648 = vmatpush1.msra.mxu0 0.0
    %649 = vmatprep.subr.mxu0 0.0
    %650 = vmatpush1.msra.mxu0 0.0
    %651 = vmatprep.subr.mxu0 0.0
    %652 = vmatpush1.msra.mxu0 0.0
    %653 = vmatprep.subr.mxu0 0.0
    %654 = vmatpush1.msra.mxu0 0.0
    %655 = vmatprep.subr.mxu0 0.0
    %656 = vmatpush1.msra.mxu0 0.0
    %657 = vmatprep.subr.mxu0 0.0
    %658 = vmatpush1.msra.mxu0 0.0
    %659 = vmatprep.subr.mxu0 0.0
    %660 = vmatpush1.msra.mxu0 0.0
    %661 = vmatprep.subr.mxu0 0.0
    %662 = vmatpush1.msra.mxu0 0.0
    %663 = vmatprep.subr.mxu0 0.0
    %664 = vmatpush1.msra.mxu0 0.0
    %665 = vmatprep.subr.mxu0 0.0
    %666 = vmatpush1.msra.mxu0 0.0
    %667 = vmatprep.subr.mxu0 0.0
    %668 = vmatpush1.msra.mxu0 0.0
    %669 = vmatprep.subr.mxu0 0.0
    %670 = vmatpush1.msra.mxu0 0.0
    %671 = vmatprep.subr.mxu0 0.0
    %672 = vmatpush1.msra.mxu0 0.0
    %673 = vmatprep.mubr.f32.mxu0 0.0
    %674 = vmatmul.mubr.f32.gmra.mrb[0].mxu0 %v607
    %v675 = vpop.f32.mrb[0].mxu0
    %v676 = vadd.f32 %v606, %v675
    %v677 = vpop.f32.mrb[0].mxu0
    %678 = vdwg.mxu0
    %vm679 = vcmask 319488
    %v680 = vsel %vm679, %v676, -inf
    %681 = vmax.xlane.f32.xlu0 %v680
    %v682 = vpop.xlane.xlu0 %681
    %v683 = vsub.f32 %v676, %v682
    %v684 = vmul.f32 %v683, 1.442695
    %v685 = vpow.pop %v684
    %v686 = vsel %vm679, %v685, 0.0
    %687 = vadd.xlane.f32.xlu0 %v686
    %v688 = vpop.xlane.xlu0 %687
    %v689 = vlog2.pop %v688
    %v690 = vmul.f32 %v689, 0.6931472
    %v691 = vsub.f32 %v683, %v690
    %vm692 = vcmask 326656
    %v693 = vsel %vm692, %v691, 0.0
    %v694 = vsel %vm412, %v403, 0.0
    %v695 = vsel %vm203, %v598, 0.0
    %v699 = vcombine.low %v693, %v694
    %v701 = vunpack.c.l.s4 1966171168
    %v702 = vunpack.c.0.s8 %v701
    %v703 = vlaneseq
    %v704 = vshrl.u32 %v703, 7
    %v705 = vsub.s32 %v702, %v704
    %v706 = vrot.slane %v699, %v705
    %v708 = vunpack.c.l.s4 1966171168
    %v709 = vunpack.c.0.s8 %v708
    %v710 = vlaneseq
    %v711 = vshrl.u32 %v710, 7
    %v712 = vsub.s32 %v709, %v711
    %v713 = vrot.slane %v695, %v712
    %v714 = vcombine.low %v706, %v713
    %v716 = vunpack.c.l.s4 1966171168
    %v717 = vunpack.c.0.s8 %v716
    %v718 = vlaneseq
    %v719 = vshrl.u32 %v718, 7
    %v720 = vsub.s32 %v717, %v719
    %v721 = vrot.slane %v714, %v720
    %v723 = vlaneseq
    %vm724 = vcmp.ge.s32.totalorder %v723, 0
    %vm725 = vcmp.lt.s32.totalorder %v723, 384
    %vm726 = vmand %vm724, %vm725
    %727 = vst.msk [vmem:[#allocation9] sm:$0x7] %vm726, %v721
    // Predicated region
    $region26: #{tpu_custom_call.1} parent=1 // pred_check
      _
    $region27: #{tpu_custom_call.1} parent=1 // pred_check_branch
      %729 = sbr.rel (0) target = $region29
    $region28: #{tpu_custom_call.1} parent=1 // pred_region
      %s731 = ssub.s32 48, 48
      %732 = vsyncadd [#allocation8], %s731
      %s734 = sshll.u32 [#allocation9], 4
      %s735 = int_to_ptr.vmem [resolvable:$true] %s734
      %737 = dma.vmem_to_hbm [thread:$0]  %s735, 48, %s5, [#allocation8]
    $region29: #{tpu_custom_call.1} parent=1 // pred_fallthru
      _
    // Predicated region
    $region30: #{tpu_custom_call.1} parent=1 // pred_check
      _
    $region31: #{tpu_custom_call.1} parent=1 // pred_check_branch
      %739 = sbr.rel (0) target = $region33
    $region32: #{tpu_custom_call.1} parent=1 // pred_region
      %740 = dma.done [#allocation8], 48
    $region33: #{tpu_custom_call.1} parent=1 // pred_fallthru
      _
    %741 = vsyncpa [#allocation7], 1
    %742 = vsyncpa [#allocation8], 1

</llo_original>
